<compile_context>
chip_gen: v7x
topology: tpu7x:2x2x1
jax: 0.10.0
libtpu: 0.0.40
codegen_flags: <defaults>
</compile_context>

<pallas_src>
import jax
import jax.numpy as jnp
from jax.experimental import pallas as pl
from jax.experimental.pallas import tpu as pltpu


def _round_up(n: int, m: int) -> int:
    return ((n + m - 1) // m) * m


def _vmem_capacity_bytes() -> int:
    """Physical VMEM per TensorCore; conservative fallback = v7x's 64 MiB."""
    try:
        info = pltpu.get_tpu_info()
        cap = int(getattr(info, "vmem_capacity_bytes", 0) or 0)
        if cap > 0:
            return cap
    except Exception:
        pass
    return 64 * 2**20


# ---------------------------------------------------------------------------
# Kernel
# ---------------------------------------------------------------------------
def dcfod_kernel(x_ref, we_ref, be_ref, wsd_ref, bsd_ref, out_ref, acc_ref):
    """Grid = (batch tiles, K tiles).

    Per (i, k): accumulate the encoder matmul into an f32 VMEM scratch; on the
    last K step apply bias + ReLU, run the fused discriminator/decoder matmul
    and store one lane-dense bf16 slab [x_e | x_sa | x_de].
    """
    # TODO(synk): Dropout(p=0.1) is treated as identity (eval semantics);
    # training-mode masking would need pltpu.prng_seed/prng_random_bits here.
    k = pl.program_id(1)
    fp = wsd_ref.shape[0]                       # static padded feature dim

    @pl.when(k == 0)
    def _():
        acc_ref[...] = jnp.zeros_like(acc_ref)

    # encoder partial: (tb, tk) @ (tk, Fp) accumulated in f32.
    acc_ref[...] += jnp.dot(x_ref[...], we_ref[...],
                            preferred_element_type=jnp.float32)

    @pl.when(k == pl.num_programs(1) - 1)
    def _():
        # bias + ReLU in f32 (keeps v5e's non-bf16 VPU happy).
        xe = jnp.maximum(acc_ref[...] + be_ref[...], 0.0)        # (tb, Fp) f32
        out_ref[:, :fp] = xe.astype(out_ref.dtype)               # lane-dense bf16

        # discriminator + decoder fused into one MXU pass (shared LHS, shared K).
        # GradientReversalLayer forward is identity, so xe feeds both heads.
        fused = jnp.dot(xe.astype(wsd_ref.dtype), wsd_ref[...],
                        preferred_element_type=jnp.float32) + bsd_ref[...]
        out_ref[:, fp:] = fused.astype(out_ref.dtype)            # lane-dense bf16


# ---------------------------------------------------------------------------
# Tiling heuristics
# ---------------------------------------------------------------------------
def _choose_tk(Ip: int, max_tk: int = 1024) -> int:
    """Largest 128-multiple divisor of Ip that is <= max_tk."""
    m = Ip // 128
    for d in range(min(m, max_tk // 128), 0, -1):
        if m % d == 0:
            return 128 * d
    return 128


def _choose_tb(B, tk, Fp, Np, act_itemsize, out_itemsize, budget_bytes):
    """Largest batch tile whose working set fits the budget, >= 2 steps/core."""
    # Per-row working set: double-buffered x tile + double-buffered output tile
    # + single f32 accumulator + live f32 temporaries (xe, fused).
    row_bytes = (2 * tk * act_itemsize
                 + 2 * (Fp + Np) * out_itemsize
                 + Fp * 4
                 + (Fp + Np) * 4)
    tb = 16
    for cand in (2048, 1024, 512, 256, 128, 64, 32, 16):
        if cand * row_bytes <= budget_bytes:
            tb = cand
            break
    # Prefer >= 4 total grid steps (2 per TensorCore on v7x) so the per-core DMA
    # pipeline actually overlaps; floor at 16 for bf16 (16,128) sublane packing.
    while tb > 16 and (B + tb - 1) // tb < 4:
        tb //= 2
    return max(tb, 16)


def _pack_params(params, input_size, Ip, Fp, Np, num_features, num_attributes,
                 compute_dtype):
    """Zero-pad + pack weights so every kernel matmul / store is 128-lane aligned."""
    we_p = jnp.zeros((Ip, Fp), compute_dtype)
    we_p = we_p.at[:input_size, :num_features].set(params["we"].astype(compute_dtype))
    be_p = jnp.zeros((1, Fp), jnp.float32)
    be_p = be_p.at[:, :num_features].set(params["be"])

    # [Ws | Wd] packed column-wise; padded rows/cols are zero so padded xe lanes
    # (which are ReLU(0)=0 anyway) contribute nothing.
    wsd_p = jnp.zeros((Fp, Np), compute_dtype)
    wsd_p = wsd_p.at[:num_features, :num_attributes].set(
        params["ws"].astype(compute_dtype))
    wsd_p = wsd_p.at[:num_features,
                     num_attributes:num_attributes + input_size].set(
                         params["wd"].astype(compute_dtype))
    bsd_p = jnp.zeros((1, Np), jnp.float32)
    bsd_p = bsd_p.at[:, :num_attributes].set(params["bs"])
    bsd_p = bsd_p.at[:, num_attributes:num_attributes + input_size].set(params["bd"])
    return we_p, be_p, wsd_p, bsd_p


# ---------------------------------------------------------------------------
# Wrapper
# ---------------------------------------------------------------------------
def dcfod_forward(x, params, *, tb=None, compute_dtype=jnp.bfloat16,
                  out_dtype=jnp.bfloat16):
    """Fused DCFOD forward. x: (B, input_size) float32. Returns (x_e, x_de, x_sa).

    Outputs are bf16 (f32 accumulation inside the kernel); cast in the caller if
    full f32 outputs are required.
    """
    B, input_size = x.shape
    num_features = params["we"].shape[1]
    num_attributes = params["ws"].shape[1]

    # Lane-dense padded dims (multiples of 128 on every matmul / store axis).
    Ip = _round_up(input_size, 128)
    Fp = _round_up(num_features, 128)
    Np = _round_up(num_attributes + input_size, 128)

    act_it = jnp.dtype(compute_dtype).itemsize
    out_it = jnp.dtype(out_dtype).itemsize

    tk = _choose_tk(Ip)
    kt = Ip // tk

    vmem_cap = _vmem_capacity_bytes()
    # Grid-constant / K-varying weight & bias residency (default double-buffered).
    weight_bytes = 2 * ((tk * Fp + Fp * Np) * act_it + (Fp + Np) * 4)
    # Generation-aware tile budget: ~37.5% of physical VMEM (~48 MiB on 128 MiB
    # v5e/v6e parts, ~24 MiB on v7x's 64 MiB), minus weight residency.
    budget = max(4 * 2**20, int(0.375 * vmem_cap) - weight_bytes)
    if tb is None:
        tb = _choose_tb(B, tk, Fp, Np, act_it, out_it, budget)

    Bp = _round_up(B, tb)
    grid = (Bp // tb, kt)

    # Pad rows/cols directly in the compute dtype (no full-size f32 copy).
    if Bp != B or Ip != input_size:
        xp = jnp.zeros((Bp, Ip), compute_dtype)
        xp = xp.at[:B, :input_size].set(x.astype(compute_dtype))
    else:
        xp = x.astype(compute_dtype)

    we_p, be_p, wsd_p, bsd_p = _pack_params(
        params, input_size, Ip, Fp, Np, num_features, num_attributes, compute_dtype)

    # Advisory cost estimate for XLA scheduling.
    flops = 2 * Bp * (Ip * Fp + Fp * Np)
    bytes_accessed = (
        Bp * Ip * act_it                           # x
        + (Ip * Fp + Fp * Np) * act_it             # packed weights
        + (Fp + Np) * 4                            # packed biases
        + Bp * (Fp + Np) * out_it                  # packed output slab
    )

    # VMEM request: actual footprint with 1.5x headroom, clamped to
    # [32 MiB default, physical VMEM - 8 MiB] so v7x keeps compiler headroom.
    tile_bytes = tb * (2 * tk * act_it + 2 * (Fp + Np) * out_it
                       + Fp * 4 + (Fp + Np) * 4)
    footprint = tile_bytes + weight_bytes
    vmem_limit = int(min(vmem_cap - 8 * 2**20,
                         max(32 * 2**20, int(1.5 * footprint))))

    out_pad = pl.pallas_call(
        dcfod_kernel,
        out_shape=jax.ShapeDtypeStruct((Bp, Fp + Np), out_dtype),
        grid=grid,
        in_specs=[
            pl.BlockSpec((tb, tk), lambda i, k: (i, k)),   # x batch/K tile
            pl.BlockSpec((tk, Fp), lambda i, k: (k, 0)),   # We K tile
            pl.BlockSpec((1, Fp), lambda i, k: (0, 0)),    # be
            pl.BlockSpec((Fp, Np), lambda i, k: (0, 0)),   # [Ws | Wd]
            pl.BlockSpec((1, Np), lambda i, k: (0, 0)),    # [bs | bd]
        ],
        out_specs=pl.BlockSpec((tb, Fp + Np), lambda i, k: (i, 0)),
        scratch_shapes=[pltpu.VMEM((tb, Fp), jnp.float32)],   # encoder accumulator
        compiler_params=pltpu.CompilerParams(
            dimension_semantics=("parallel", "arbitrary"),
            vmem_limit_bytes=vmem_limit),
        cost_estimate=pl.CostEstimate(
            flops=flops, transcendentals=0, bytes_accessed=bytes_accessed),
    )(xp, we_p, be_p, wsd_p, bsd_p)

    # Slice real rows/columns back out (wrapper-side, cheap).
    x_e = out_pad[:B, :num_features]
    x_sa = out_pad[:B, Fp:Fp + num_attributes]
    x_de = out_pad[:B, Fp + num_attributes:Fp + num_attributes + input_size]
    x_de = x_de.reshape(-1, 1, input_size)   # PyTorch: x_de.view(-1, 1, input_size)
    return x_e, x_de, x_sa


# ---------------------------------------------------------------------------
# Parameter init (PyTorch-equivalent) and plain-JAX reference
# ---------------------------------------------------------------------------
def xavier_uniform(key, fan_in, fan_out):
    """torch.nn.init.xavier_uniform_ equivalent, returned as (in, out)."""
    limit = (6.0 / (fan_in + fan_out)) ** 0.5
    w = jax.random.uniform(key, (fan_out, fan_in), jnp.float32, -limit, limit)
    return w.T


def make_params(key, input_size, num_classes, num_features, num_attributes):
    k_enc, k_dec, k_dis, k_benc, k_bdec, k_bdis = jax.random.split(key, 6)

    def linear_bias(key, fan_in, fan_out):
        bound = 1.0 / (fan_in ** 0.5)
        return jax.random.uniform(key, (1, fan_out), jnp.float32, -bound, bound)

    return {
        "we": xavier_uniform(k_enc, input_size, num_features),
        "be": linear_bias(k_benc, input_size, num_features),
        "wd": xavier_uniform(k_dec, num_features, input_size),
        "bd": linear_bias(k_bdec, num_features, input_size),
        "ws": xavier_uniform(k_dis, num_features, num_attributes),
        "bs": linear_bias(k_bdis, num_features, num_attributes),
        # clusterCenter exists in the module but is unused in forward()
        "cluster_center": jnp.zeros((num_classes, num_features), jnp.float32),
    }


def reference_forward(x, params, compute_dtype=jnp.bfloat16):
    """Plain-JAX reference with the same bf16-operand / f32-accumulate numerics."""
    xc = x.astype(compute_dtype)
    we = params["we"].astype(compute_dtype)
    ws = params["ws"].astype(compute_dtype)
    wd = params["wd"].astype(compute_dtype)
    xe = jnp.maximum(
        jnp.dot(xc, we, preferred_element_type=jnp.float32) + params["be"], 0.0)
    xec = xe.astype(compute_dtype)
    xsa = jnp.dot(xec, ws, preferred_element_type=jnp.float32) + params["bs"]
    xde = jnp.dot(xec, wd, preferred_element_type=jnp.float32) + params["bd"]
    return xe, xde.reshape(-1, 1, x.shape[1]), xsa


# ---------------------------------------------------------------------------
# Demo / self-test
# ---------------------------------------------------------------------------
if __name__ == "__main__":
    # Small but tiling-exercising shapes: with these dims the chosen batch tile
    # is 64, so B=200 is deliberately not a multiple of tb (padded-remainder
    # path covered) and the grid has 4 batch steps (pipelining / megacore).
    batch = 200
    input_size = 64
    num_classes = 4
    num_features = 32
    num_attributes = 8

    key = jax.random.PRNGKey(0)
    k_x, k_p = jax.random.split(key)

    x = jax.random.normal(k_x, (batch, input_size), jnp.float32)
    params = make_params(k_p, input_size, num_classes, num_features, num_attributes)

    x_e, x_de, x_sa = dcfod_forward(x, params)
    jax.block_until_ready((x_e, x_de, x_sa))

    # Sanity check against a plain-JAX reference with the same bf16/f32 numerics
    # (reference outputs rounded to bf16 to match the kernel's bf16 stores).
    ref_e, ref_de, ref_sa = reference_forward(x, params)
    ref_e = ref_e.astype(jnp.bfloat16)
    ref_de = ref_de.astype(jnp.bfloat16)
    ref_sa = ref_sa.astype(jnp.bfloat16)

    assert x_e.shape == (batch, num_features)
    assert x_de.shape == (batch, 1, input_size)
    assert x_sa.shape == (batch, num_attributes)
    assert jnp.allclose(x_e.astype(jnp.float32), ref_e.astype(jnp.float32),
                        atol=2e-2, rtol=2e-2)
    assert jnp.allclose(x_de.astype(jnp.float32), ref_de.astype(jnp.float32),
                        atol=2e-2, rtol=2e-2)
    assert jnp.allclose(x_sa.astype(jnp.float32), ref_sa.astype(jnp.float32),
                        atol=2e-2, rtol=2e-2)

    print("KERNEL_OK")
</pallas_src>

<mosaic_0001>
module attributes {stable_mosaic.version = 11 : i64} {
  func.func @dcfod_kernel(%arg0: i32, %arg1: i32, %arg2: memref<64x128xbf16, #tpu.memory_space<vmem>>, %arg3: memref<128x128xbf16, #tpu.memory_space<vmem>>, %arg4: memref<1x128xf32, #tpu.memory_space<vmem>>, %arg5: memref<128x128xbf16, #tpu.memory_space<vmem>>, %arg6: memref<1x128xf32, #tpu.memory_space<vmem>>, %arg7: memref<64x256xbf16, #tpu.memory_space<vmem>>, %arg8: memref<64x128xf32, #tpu.memory_space<vmem>>) attributes {dimension_semantics = [#tpu.dimension_semantics<parallel>, #tpu.dimension_semantics<arbitrary>], iteration_bounds = array<i64: 4, 1>, scalar_prefetch = 0 : i64, scratch_operands = 1 : i64, tpu.core_type = #tpu.core_type<tc>, window_params = [{transform_indices = @transform_0, window_bounds = array<i64: 64, 128>}, {transform_indices = @transform_1, window_bounds = array<i64: 128, 128>}, {pipeline_mode = #tpu.pipeline_mode<synchronous>, transform_indices = @transform_2, window_bounds = array<i64: 1, 128>}, {pipeline_mode = #tpu.pipeline_mode<synchronous>, transform_indices = @transform_3, window_bounds = array<i64: 128, 128>}, {pipeline_mode = #tpu.pipeline_mode<synchronous>, transform_indices = @transform_4, window_bounds = array<i64: 1, 128>}, {transform_indices = @transform_5, window_bounds = array<i64: 64, 256>}]} {
    %c0_i32 = arith.constant 0 : i32
    %0 = arith.cmpi eq, %arg1, %c0_i32 : i32
    %1 = arith.extui %0 : i1 to i32
    %c0_i32_0 = arith.constant 0 : i32
    %2 = arith.cmpi ne, %1, %c0_i32_0 : i32
    scf.if %2 {
      %cst_10 = arith.constant 0.000000e+00 : f32
      %12 = vector.broadcast %cst_10 : f32 to vector<64x128xf32>
      %c0_11 = arith.constant 0 : index
      %c0_12 = arith.constant 0 : index
      %13 = vector.load %arg8[%c0_11, %c0_12] : memref<64x128xf32, #tpu.memory_space<vmem>>, vector<64x128xf32>
      tpu.vector_store %arg8[%c0_11, %c0_12], %12 {strides = array<i32>} : memref<64x128xf32, #tpu.memory_space<vmem>>, vector<64x128xf32>,
    } else {
    }
    %c0 = arith.constant 0 : index
    %c0_1 = arith.constant 0 : index
    %3 = vector.load %arg8[%c0, %c0_1] : memref<64x128xf32, #tpu.memory_space<vmem>>, vector<64x128xf32>
    %c0_2 = arith.constant 0 : index
    %c0_3 = arith.constant 0 : index
    %4 = vector.load %arg2[%c0_2, %c0_3] : memref<64x128xbf16, #tpu.memory_space<vmem>>, vector<64x128xbf16>
    %c0_4 = arith.constant 0 : index
    %c0_5 = arith.constant 0 : index
    %5 = vector.load %arg3[%c0_4, %c0_5] : memref<128x128xbf16, #tpu.memory_space<vmem>>, vector<128x128xbf16>
    %cst = arith.constant dense<0.000000e+00> : vector<64x128xf32>
    %6 = tpu.matmul %4, %5, %cst {dimension_numbers = #tpu.dot_dimension_numbers<[1], [0], [0], [1], [0, 0, 1, 1], [], []>} : vector<64x128xbf16>, vector<128x128xbf16>, vector<64x128xf32> -> vector<64x128xf32>
    %7 = arith.addf %3, %6 : vector<64x128xf32>
    %c0_6 = arith.constant 0 : index
    %c0_7 = arith.constant 0 : index
    %8 = vector.load %arg8[%c0_6, %c0_7] : memref<64x128xf32, #tpu.memory_space<vmem>>, vector<64x128xf32>
    tpu.vector_store %arg8[%c0_6, %c0_7], %7 {strides = array<i32>} : memref<64x128xf32, #tpu.memory_space<vmem>>, vector<64x128xf32>,
    %c0_i32_8 = arith.constant 0 : i32
    %9 = arith.cmpi eq, %arg1, %c0_i32_8 : i32
    %10 = arith.extui %9 : i1 to i32
    %c0_i32_9 = arith.constant 0 : i32
    %11 = arith.cmpi ne, %10, %c0_i32_9 : i32
    scf.if %11 {
      %c0_10 = arith.constant 0 : index
      %c0_11 = arith.constant 0 : index
      %12 = vector.load %arg8[%c0_10, %c0_11] : memref<64x128xf32, #tpu.memory_space<vmem>>, vector<64x128xf32>
      %c0_12 = arith.constant 0 : index
      %c0_13 = arith.constant 0 : index
      %13 = vector.load %arg4[%c0_12, %c0_13] : memref<1x128xf32, #tpu.memory_space<vmem>>, vector<1x128xf32>
      %14 = vector.broadcast %13 : vector<1x128xf32> to vector<64x128xf32>
      %15 = arith.addf %12, %14 : vector<64x128xf32>
      %cst_14 = arith.constant 0.000000e+00 : f32
      %16 = vector.broadcast %cst_14 : f32 to vector<64x128xf32>
      %17 = arith.maximumf %15, %16 : vector<64x128xf32>
      %18 = arith.truncf %17 : vector<64x128xf32> to vector<64x128xbf16>
      %c0_15 = arith.constant 0 : index
      %c0_16 = arith.constant 0 : index
      %19 = vector.load %arg7[%c0_15, %c0_16] : memref<64x256xbf16, #tpu.memory_space<vmem>>, vector<64x128xbf16>
      tpu.vector_store %arg7[%c0_15, %c0_16], %18 {strides = array<i32>} : memref<64x256xbf16, #tpu.memory_space<vmem>>, vector<64x128xbf16>,
      %20 = arith.truncf %17 : vector<64x128xf32> to vector<64x128xbf16>
      %c0_17 = arith.constant 0 : index
      %c0_18 = arith.constant 0 : index
      %21 = vector.load %arg5[%c0_17, %c0_18] : memref<128x128xbf16, #tpu.memory_space<vmem>>, vector<128x128xbf16>
      %cst_19 = arith.constant dense<0.000000e+00> : vector<64x128xf32>
      %22 = tpu.matmul %20, %21, %cst_19 {dimension_numbers = #tpu.dot_dimension_numbers<[1], [0], [0], [1], [0, 0, 1, 1], [], []>} : vector<64x128xbf16>, vector<128x128xbf16>, vector<64x128xf32> -> vector<64x128xf32>
      %c0_20 = arith.constant 0 : index
      %c0_21 = arith.constant 0 : index
      %23 = vector.load %arg6[%c0_20, %c0_21] : memref<1x128xf32, #tpu.memory_space<vmem>>, vector<1x128xf32>
      %24 = vector.broadcast %23 : vector<1x128xf32> to vector<64x128xf32>
      %25 = arith.addf %22, %24 : vector<64x128xf32>
      %26 = arith.truncf %25 : vector<64x128xf32> to vector<64x128xbf16>
      %c0_22 = arith.constant 0 : index
      %c128 = arith.constant 128 : index
      %27 = vector.load %arg7[%c0_22, %c128] : memref<64x256xbf16, #tpu.memory_space<vmem>>, vector<64x128xbf16>
      tpu.vector_store %arg7[%c0_22, %c128], %26 {strides = array<i32>} : memref<64x256xbf16, #tpu.memory_space<vmem>>, vector<64x128xbf16>,
    } else {
    }
    return
  }
  func.func @transform_0(%arg0: i32, %arg1: i32) -> (i32, i32) {
    %c0_i32 = arith.constant 0 : i32
    return %arg0, %arg1 : i32, i32
  }
  func.func @transform_1(%arg0: i32, %arg1: i32) -> (i32, i32) {
    %c0_i32 = arith.constant 0 : i32
    %c0_i32_0 = arith.constant 0 : i32
    return %arg1, %c0_i32 : i32, i32
  }
  func.func @transform_2(%arg0: i32, %arg1: i32) -> (i32, i32) {
    %c0_i32 = arith.constant 0 : i32
    %c0_i32_0 = arith.constant 0 : i32
    %c0_i32_1 = arith.constant 0 : i32
    return %c0_i32, %c0_i32_0 : i32, i32
  }
  func.func @transform_3(%arg0: i32, %arg1: i32) -> (i32, i32) {
    %c0_i32 = arith.constant 0 : i32
    %c0_i32_0 = arith.constant 0 : i32
    %c0_i32_1 = arith.constant 0 : i32
    return %c0_i32, %c0_i32_0 : i32, i32
  }
  func.func @transform_4(%arg0: i32, %arg1: i32) -> (i32, i32) {
    %c0_i32 = arith.constant 0 : i32
    %c0_i32_0 = arith.constant 0 : i32
    %c0_i32_1 = arith.constant 0 : i32
    return %c0_i32, %c0_i32_0 : i32, i32
  }
  func.func @transform_5(%arg0: i32, %arg1: i32) -> (i32, i32) {
    %c0_i32 = arith.constant 0 : i32
    %c0_i32_0 = arith.constant 0 : i32
    return %arg0, %c0_i32 : i32, i32
  }
}

</mosaic_0001>

<llo_original>
// kernel: tpu_custom_call.1
$region0: #{tpu_custom_call.1}
  #allocation0 [shape = 'u32[]', space=smem, size = 0x4, offset = 0x4, fixed_abs, tag = 'smem constant byte address 0x4 - core index']
  #allocation1 [shape = 'u32[144,128]{1,0:T(1,128)}', space=vmem, size = 0x12000, scoped, tag = 'internal scratch']
  #allocation2 [shape = 'f32[64,128]{1,0:T(8,128)}', space=vmem, size = 0x8000, scoped, tag = 'scratch operand']
  %s0 = inlined_call_operand.hbm [shape: bf16[256,128], index: 0, kind: input, shape index: {}]
  %s1 = inlined_call_operand.hbm [shape: bf16[128,128], index: 1, kind: input, shape index: {}]
  %s2 = inlined_call_operand.vmem [shape: f32[1,128], index: 2, kind: input, shape index: {}]
  %s3 = inlined_call_operand.hbm [shape: bf16[128,128], index: 3, kind: input, shape index: {}]
  %s4 = inlined_call_operand.vmem [shape: f32[1,128], index: 4, kind: input, shape index: {}]
  %s5 = inlined_call_operand.hbm [shape: bf16[256,256], index: 5, kind: output, shape index: {}]
  %s6 = sld [smem:[#allocation0]]
  $region73: #{tpu_custom_call.1} parent=0
    _
  %s8 = ssub.s32 1, %s6
  %s9 = scalar_select 0, %s8, %s6
  $region1: #{tpu_custom_call.1} parent=0
    #allocation3 [shape = 'u8[32768]{0}', space=vmem, size = 0x8000, scoped, tag = 'input window, operand 0']
    #allocation4 [shape = 's32[2]{0}', space=sflag, size = 0x8, scoped, tag = 'scoped memory for tpu_custom_call.1']
    #allocation5 [shape = 's32[2]{0}', space=sflag, size = 0x8, scoped, tag = 'scoped memory for tpu_custom_call.1']
    #allocation6 [shape = 'u8[32768]{0}', space=vmem, size = 0x8000, scoped, tag = 'input window, operand 1, single buffered']
    #allocation7 [shape = 's32[1]{0}', space=sflag, size = 0x4, scoped, tag = 'scoped memory for tpu_custom_call.1']
    #allocation8 [shape = 'u8[32768]{0}', space=vmem, size = 0x8000, scoped, tag = 'input window, operand 3, single buffered']
    #allocation9 [shape = 'u8[65536]{0}', space=vmem, size = 0x10000, scoped, tag = 'output window, operand 0']
    %10 = vsyncpa [#allocation4], 0
    %s11 = scalar_lea.sflag [#allocation4], 1
    %12 = vsyncpa %s11, 0
    %13 = vsyncpa [#allocation7], 0
    %14 = vsyncpa [#allocation5], 0
    %s15 = scalar_lea.sflag [#allocation5], 1
    %16 = vsyncpa %s15, 0
    loop: start=0, step=1, limit=6
    $region2: #{tpu_custom_call.1} parent=1 // loop_pre_header
      _
    $region3: #{tpu_custom_call.1} parent=1 // loop_header
      %s18 = sphi 0, %s22
      %p19 = scmp.ge.s32.totalorder %s18, 6
      %s25 = sphi 0, %s37
      %s26 = sphi 0, %s33
      %s27 = sphi 0, %s25
      %s28 = sphi 0, %s26
      %s29 = sphi 0, %s27
      %s30 = sphi 0, %s28
      %s42 = sphi 0, %s44
      %s45 = sphi 0, %s42
      %s46 = sphi 0, %s45
      %s62 = sphi 0, %s46
      %s68 = sphi 0, %s70
      %s71 = sphi 0, %s68
      %s72 = sphi 0, %s71
      %s88 = sphi 0, %s72
      %s92 = sphi 0, %s92
      %s94 = sphi 0, %s92
      %s95 = sphi 0, %s94
      %s109 = sphi 0, %s95
      %s113 = sphi 0, %s113
      %s115 = sphi 0, %s113
      %s116 = sphi 0, %s115
      %s130 = sphi 0, %s116
      %s134 = sphi 0, %s134
      %s136 = sphi 0, %s134
      %s137 = sphi 0, %s136
      %s151 = sphi 0, %s137
      %s157 = sphi 0, %s159
      %s160 = sphi 0, %s157
      %s161 = sphi 0, %s160
      %s177 = sphi 0, %s161
    $region4: #{tpu_custom_call.1} parent=1 // loop_header_branch
      %21 = sbr.rel (%p19) target = $region8
    $region5: #{tpu_custom_call.1} parent=1 // loop_body
      %s23 = ssub.s32 %s18, 1
      %s24 = ssub.s32 %s18, 2
      %s31 = sadd.s32 1, %s26
      %p32 = scmp.ge.s32.totalorder %s31, 1
      %s33 = scalar_select %p32, 0, %s31
      %s34 = sadd.s32 1, %s25
      %s35 = scalar_select %p32, %s34, %s25
      %p36 = scmp.ge.s32.totalorder %s35, 4
      %s37 = scalar_select %p36, 0, %s35
      %s38 = ssub.s32 %s25, %s37
      %s39 = ssub.s32 %s26, %s33
      %s40 = sor.u32 %s38, %s39
      %p41 = scmp.eq.s32.totalorder %s40, 0
      %s43 = sadd.s32 %s42, 1
      %s44 = scalar_select %p41, %s42, %s43
      %p47 = pneg %p41
      %p48 = scmp.eq.s32.totalorder %s18, 3
      %p49 = por %p47, %p48
      %p50 = scmp.ne.s32.totalorder %s42, %s45
      %p51 = scmp.eq.s32.totalorder %s18, 0
      %p52 = por %p50, %p51
      %p53 = scmp.ne.s32.totalorder %s42, %s45
      %p54 = scmp.eq.s32.totalorder %s23, 3
      %p55 = por %p53, %p54
      %p56 = scmp.ne.s32.totalorder %s45, %s46
      %p57 = scmp.eq.s32.totalorder %s23, 0
      %p58 = por %p56, %p57
      %p59 = scmp.ne.s32.totalorder %s45, %s46
      %p60 = scmp.eq.s32.totalorder %s24, 3
      %p61 = por %p59, %p60
      %p63 = scmp.ne.s32.totalorder %s46, %s62
      %p64 = scmp.eq.s32.totalorder %s24, 0
      %p65 = por %p63, %p64
      %s66 = ssub.s32 %s26, %s33
      %p67 = scmp.eq.s32.totalorder %s66, 0
      %s69 = sadd.s32 %s68, 1
      %s70 = scalar_select %p67, %s68, %s69
      %p73 = pneg %p67
      %p74 = scmp.eq.s32.totalorder %s18, 3
      %p75 = por %p73, %p74
      %p76 = scmp.ne.s32.totalorder %s68, %s71
      %p77 = scmp.eq.s32.totalorder %s18, 0
      %p78 = por %p76, %p77
      %p79 = scmp.ne.s32.totalorder %s68, %s71
      %p80 = scmp.eq.s32.totalorder %s23, 3
      %p81 = por %p79, %p80
      %p82 = scmp.ne.s32.totalorder %s71, %s72
      %p83 = scmp.eq.s32.totalorder %s23, 0
      %p84 = por %p82, %p83
      %p85 = scmp.ne.s32.totalorder %s71, %s72
      %p86 = scmp.eq.s32.totalorder %s24, 3
      %p87 = por %p85, %p86
      %p89 = scmp.ne.s32.totalorder %s72, %s88
      %p90 = scmp.eq.s32.totalorder %s24, 0
      %p91 = por %p89, %p90
      %s93 = sadd.s32 %s92, 1
      %p96 = scmp.eq.s32.totalorder %s18, 3
      %p97 = scmp.ne.s32.totalorder %s92, %s94
      %p98 = scmp.eq.s32.totalorder %s18, 0
      %p99 = por %p97, %p98
      %p100 = scmp.ne.s32.totalorder %s92, %s94
      %p101 = scmp.eq.s32.totalorder %s23, 3
      %p102 = por %p100, %p101
      %p103 = scmp.ne.s32.totalorder %s94, %s95
      %p104 = scmp.eq.s32.totalorder %s23, 0
      %p105 = por %p103, %p104
      %p106 = scmp.ne.s32.totalorder %s94, %s95
      %p107 = scmp.eq.s32.totalorder %s24, 3
      %p108 = por %p106, %p107
      %p110 = scmp.ne.s32.totalorder %s95, %s109
      %p111 = scmp.eq.s32.totalorder %s24, 0
      %p112 = por %p110, %p111
      %s114 = sadd.s32 %s113, 1
      %p117 = scmp.eq.s32.totalorder %s18, 3
      %p118 = scmp.ne.s32.totalorder %s113, %s115
      %p119 = scmp.eq.s32.totalorder %s18, 0
      %p120 = por %p118, %p119
      %p121 = scmp.ne.s32.totalorder %s113, %s115
      %p122 = scmp.eq.s32.totalorder %s23, 3
      %p123 = por %p121, %p122
      %p124 = scmp.ne.s32.totalorder %s115, %s116
      %p125 = scmp.eq.s32.totalorder %s23, 0
      %p126 = por %p124, %p125
      %p127 = scmp.ne.s32.totalorder %s115, %s116
      %p128 = scmp.eq.s32.totalorder %s24, 3
      %p129 = por %p127, %p128
      %p131 = scmp.ne.s32.totalorder %s116, %s130
      %p132 = scmp.eq.s32.totalorder %s24, 0
      %p133 = por %p131, %p132
      %s135 = sadd.s32 %s134, 1
      %p138 = scmp.eq.s32.totalorder %s18, 3
      %p139 = scmp.ne.s32.totalorder %s134, %s136
      %p140 = scmp.eq.s32.totalorder %s18, 0
      %p141 = por %p139, %p140
      %p142 = scmp.ne.s32.totalorder %s134, %s136
      %p143 = scmp.eq.s32.totalorder %s23, 3
      %p144 = por %p142, %p143
      %p145 = scmp.ne.s32.totalorder %s136, %s137
      %p146 = scmp.eq.s32.totalorder %s23, 0
      %p147 = por %p145, %p146
      %p148 = scmp.ne.s32.totalorder %s136, %s137
      %p149 = scmp.eq.s32.totalorder %s24, 3
      %p150 = por %p148, %p149
      %p152 = scmp.ne.s32.totalorder %s137, %s151
      %p153 = scmp.eq.s32.totalorder %s24, 0
      %p154 = por %p152, %p153
      %s155 = ssub.s32 %s25, %s37
      %p156 = scmp.eq.s32.totalorder %s155, 0
      %s158 = sadd.s32 %s157, 1
      %s159 = scalar_select %p156, %s157, %s158
      %p162 = pneg %p156
      %p163 = scmp.eq.s32.totalorder %s18, 3
      %p164 = por %p162, %p163
      %p165 = scmp.ne.s32.totalorder %s157, %s160
      %p166 = scmp.eq.s32.totalorder %s18, 0
      %p167 = por %p165, %p166
      %p168 = scmp.ne.s32.totalorder %s157, %s160
      %p169 = scmp.eq.s32.totalorder %s23, 3
      %p170 = por %p168, %p169
      %p171 = scmp.ne.s32.totalorder %s160, %s161
      %p172 = scmp.eq.s32.totalorder %s23, 0
      %p173 = por %p171, %p172
      %p174 = scmp.ne.s32.totalorder %s160, %s161
      %p175 = scmp.eq.s32.totalorder %s24, 3
      %p176 = por %p174, %p175
      %p178 = scmp.ne.s32.totalorder %s161, %s177
      %p179 = scmp.eq.s32.totalorder %s24, 0
      %p180 = por %p178, %p179
      %p181 = scmp.le.s32.totalorder 1, %s18
      %p182 = scmp.lt.s32.totalorder %s18, 5
      %p183 = pnand %p181, %p182
      %p184 = pneg %p183
      // Predicated region
      $region9: #{tpu_custom_call.1} parent=5 // pred_check
        _
      $region10: #{tpu_custom_call.1} parent=5 // pred_check_branch
        %186 = sbr.rel (%p183) target = $region12
      $region11: #{tpu_custom_call.1} parent=5 // pred_region
        %s187 = ssub.s32 %s18, 1
        // Predicated region
        $region13: #{tpu_custom_call.1} parent=11 // pred_check
          %p188 = pneg %p84
        $region14: #{tpu_custom_call.1} parent=11 // pred_check_branch
          %190 = sbr.rel (%p188) target = $region16
        $region15: #{tpu_custom_call.1} parent=11 // pred_region
          %s191 = smul.u32 16, %s28
          %s193 = ssub.s32 1024, 1024
          %194 = vsyncadd [#allocation7], %s193
          %s195 = smul.addr %s191, 64
          %s196 = scalar_lea.hbm %s1, %s195
          %s197 = sshll.u32 [#allocation6], 4
          %s198 = int_to_ptr.vmem [resolvable:$true] %s197
          %203 = dma.hbm_to_vmem [thread:$0]  %s196, 1024, %s198, [#allocation7], 64, 64, 4
        $region16: #{tpu_custom_call.1} parent=11 // pred_fallthru
          _
        // Predicated region
        $region17: #{tpu_custom_call.1} parent=11 // pred_check
          %p204 = pneg %p105
        $region18: #{tpu_custom_call.1} parent=11 // pred_check_branch
          %206 = sbr.rel (%p204) target = $region20
        $region19: #{tpu_custom_call.1} parent=11 // pred_region
          _
        $region20: #{tpu_custom_call.1} parent=11 // pred_fallthru
          _
        // Predicated region
        $region21: #{tpu_custom_call.1} parent=11 // pred_check
          %p207 = pneg %p126
        $region22: #{tpu_custom_call.1} parent=11 // pred_check_branch
          %209 = sbr.rel (%p207) target = $region24
        $region23: #{tpu_custom_call.1} parent=11 // pred_region
          %s211 = ssub.s32 1024, 1024
          %212 = vsyncadd [#allocation7], %s211
          %s213 = sshll.u32 [#allocation8], 4
          %s214 = int_to_ptr.vmem [resolvable:$true] %s213
          %219 = dma.hbm_to_vmem [thread:$0]  %s3, 1024, %s214, [#allocation7], 64, 64, 4
        $region24: #{tpu_custom_call.1} parent=11 // pred_fallthru
          _
        // Predicated region
        $region25: #{tpu_custom_call.1} parent=11 // pred_check
          %p220 = pneg %p147
        $region26: #{tpu_custom_call.1} parent=11 // pred_check_branch
          %222 = sbr.rel (%p220) target = $region28
        $region27: #{tpu_custom_call.1} parent=11 // pred_region
          _
        $region28: #{tpu_custom_call.1} parent=11 // pred_fallthru
          _
      $region12: #{tpu_custom_call.1} parent=5 // pred_fallthru
        _
      %p223 = scmp.lt.s32.totalorder %s18, 4
      // Predicated region
      $region29: #{tpu_custom_call.1} parent=5 // pred_check
        %p224 = pneg %p223
      $region30: #{tpu_custom_call.1} parent=5 // pred_check_branch
        %226 = sbr.rel (%p224) target = $region32
      $region31: #{tpu_custom_call.1} parent=5 // pred_region
        // Predicated region
        $region33: #{tpu_custom_call.1} parent=31 // pred_check
          %p227 = pneg %p52
        $region34: #{tpu_custom_call.1} parent=31 // pred_check_branch
          %229 = sbr.rel (%p227) target = $region36
        $region35: #{tpu_custom_call.1} parent=31 // pred_region
          %s230 = sand.u32 %s42, 1
          %s231 = scalar_lea.sflag [#allocation4], %s230
          %s232 = sand.u32 %s42, 1
          %s233 = smul.addr %s232, 32
          %s234 = scalar_lea.vmem [#allocation3], %s233
          %s235 = smul.u32 8, %s25
          %s237 = ssub.s32 512, 512
          %238 = vsyncadd %s231, %s237
          %s239 = sadd.s32 %s26, %s235
          %s240 = smul.addr %s239, 64
          %s241 = scalar_lea.hbm %s0, %s240
          %s242 = sshll.u32 %s234, 4
          %s243 = int_to_ptr.vmem [resolvable:$true] %s242
          %248 = dma.hbm_to_vmem [thread:$0]  %s241, 512, %s243, %s231, 64, 64, 4
        $region36: #{tpu_custom_call.1} parent=31 // pred_fallthru
          _
      $region32: #{tpu_custom_call.1} parent=5 // pred_fallthru
        _
      %p249 = scmp.le.s32.totalorder 1, %s18
      %p250 = scmp.lt.s32.totalorder %s18, 5
      %p251 = pnand %p249, %p250
      %p252 = pneg %p251
      // Predicated region
      $region37: #{tpu_custom_call.1} parent=5 // pred_check
        _
      $region38: #{tpu_custom_call.1} parent=5 // pred_check_branch
        %254 = sbr.rel (%p251) target = $region40
      $region39: #{tpu_custom_call.1} parent=5 // pred_region
        %s255 = ssub.s32 %s18, 1
        %s256 = sand.u32 %s45, 1
        %s257 = scalar_lea.sflag [#allocation4], %s256
        %s258 = sand.u32 %s45, 1
        %s259 = smul.addr %s258, 32
        %s260 = scalar_lea.vmem [#allocation3], %s259
        // Predicated region
        $region41: #{tpu_custom_call.1} parent=39 // pred_check
          %p261 = pneg %p58
        $region42: #{tpu_custom_call.1} parent=39 // pred_check_branch
          %263 = sbr.rel (%p261) target = $region44
        $region43: #{tpu_custom_call.1} parent=39 // pred_region
          %264 = dma.done %s257, 512
        $region44: #{tpu_custom_call.1} parent=39 // pred_fallthru
          _
        // Predicated region
        $region45: #{tpu_custom_call.1} parent=39 // pred_check
          %p265 = pneg %p84
        $region46: #{tpu_custom_call.1} parent=39 // pred_check_branch
          %267 = sbr.rel (%p265) target = $region48
        $region47: #{tpu_custom_call.1} parent=39 // pred_region
          %268 = dma.done [#allocation7], 1024
        $region48: #{tpu_custom_call.1} parent=39 // pred_fallthru
          _
        // Predicated region
        $region49: #{tpu_custom_call.1} parent=39 // pred_check
          %p269 = pneg %p126
        $region50: #{tpu_custom_call.1} parent=39 // pred_check_branch
          %271 = sbr.rel (%p269) target = $region52
        $region51: #{tpu_custom_call.1} parent=39 // pred_region
          %272 = dma.done [#allocation7], 1024
        $region52: #{tpu_custom_call.1} parent=39 // pred_fallthru
          _
        %s273 = sand.u32 %s45, 1
        %s274 = scalar_lea.sflag [#allocation4], %s273
        %s275 = sand.u32 %s45, 1
        %s276 = smul.addr %s275, 32
        %s277 = scalar_lea.vmem [#allocation3], %s276
        %p278 = pneg %p58
        %p279 = pneg %p55
        %p280 = pneg %p84
        %p281 = pneg %p81
        %p282 = pneg %p105
        %p283 = pneg %p102
        %p284 = pneg %p126
        %p285 = pneg %p123
        %p286 = pneg %p147
        %p287 = pneg %p144
        %p288 = pneg %p173
        %p289 = pneg %p170
        %s290 = sand.u32 %s160, 1
        %s291 = scalar_lea.sflag [#allocation5], %s290
        %s292 = sand.u32 %s160, 1
        %s293 = smul.addr %s292, 64
        %s294 = scalar_lea.vmem [#allocation9], %s293
        %s295 = smul.u32 8, %s27
        %s296 = smul.u32 16, %s28
        %s297 = smul.u32 8, %s27
        %p299 = scmp.eq.s32.totalorder %s28, 0
        // Predicated region
        $region53: #{tpu_custom_call.1} parent=39 // pred_check
          %p300 = pneg %p299
        $region54: #{tpu_custom_call.1} parent=39 // pred_check_branch
          %302 = sbr.rel (%p300) target = $region56
        $region55: #{tpu_custom_call.1} parent=39 // pred_region
          %303 = vst [vmem:[#allocation2] sm:$0xff] 0.0
          %304 = vst [vmem:[#allocation2 + $0x8] sm:$0xff] 0.0
          %305 = vst [vmem:[#allocation2 + $0x10] sm:$0xff] 0.0
          %306 = vst [vmem:[#allocation2 + $0x18] sm:$0xff] 0.0
          %307 = vst [vmem:[#allocation2 + $0x20] sm:$0xff] 0.0
          %308 = vst [vmem:[#allocation2 + $0x28] sm:$0xff] 0.0
          %309 = vst [vmem:[#allocation2 + $0x30] sm:$0xff] 0.0
          %310 = vst [vmem:[#allocation2 + $0x38] sm:$0xff] 0.0
        $region56: #{tpu_custom_call.1} parent=39 // pred_fallthru
          _
        %v311 = vld [vmem:[#allocation2] sm:$0xff]
        %v312 = vld [vmem:[#allocation2 + $0x8] sm:$0xff]
        %v313 = vld [vmem:[#allocation2 + $0x10] sm:$0xff]
        %v314 = vld [vmem:[#allocation2 + $0x18] sm:$0xff]
        %v315 = vld [vmem:[#allocation2 + $0x20] sm:$0xff]
        %v316 = vld [vmem:[#allocation2 + $0x28] sm:$0xff]
        %v317 = vld [vmem:[#allocation2 + $0x30] sm:$0xff]
        %v318 = vld [vmem:[#allocation2 + $0x38] sm:$0xff]
        %v319 = vld [vmem:[%s260] sm:$0xf]
        %v320 = vld [vmem:[%s260 + $0x4] sm:$0xf]
        %v321 = vld [vmem:[%s260 + $0x8] sm:$0xf]
        %v322 = vld [vmem:[%s260 + $0xc] sm:$0xf]
        %v323 = vld [vmem:[%s260 + $0x10] sm:$0xf]
        %v324 = vld [vmem:[%s260 + $0x14] sm:$0xf]
        %v325 = vld [vmem:[%s260 + $0x18] sm:$0xf]
        %v326 = vld [vmem:[%s260 + $0x1c] sm:$0xf]
        %v327 = vld [vmem:[#allocation6] sm:$0xf]
        %v328 = vld [vmem:[#allocation6 + $0x4] sm:$0xf]
        %v329 = vld [vmem:[#allocation6 + $0x8] sm:$0xf]
        %v330 = vld [vmem:[#allocation6 + $0xc] sm:$0xf]
        %v331 = vld [vmem:[#allocation6 + $0x10] sm:$0xf]
        %v332 = vld [vmem:[#allocation6 + $0x14] sm:$0xf]
        %v333 = vld [vmem:[#allocation6 + $0x18] sm:$0xf]
        %v334 = vld [vmem:[#allocation6 + $0x1c] sm:$0xf]
        %v335 = vld [vmem:[#allocation6 + $0x20] sm:$0xf]
        %v336 = vld [vmem:[#allocation6 + $0x24] sm:$0xf]
        %v337 = vld [vmem:[#allocation6 + $0x28] sm:$0xf]
        %v338 = vld [vmem:[#allocation6 + $0x2c] sm:$0xf]
        %v339 = vld [vmem:[#allocation6 + $0x30] sm:$0xf]
        %v340 = vld [vmem:[#allocation6 + $0x34] sm:$0xf]
        %v341 = vld [vmem:[#allocation6 + $0x38] sm:$0xf]
        %v342 = vld [vmem:[#allocation6 + $0x3c] sm:$0xf]
        %v351 = vunpack.c.l.b16 %v319
        %v352 = vunpack.c.l.b16 %v320
        %v353 = vunpack.c.l.b16 %v321
        %v354 = vunpack.c.l.b16 %v322
        %v355 = vunpack.c.l.b16 %v323
        %v356 = vunpack.c.l.b16 %v324
        %v357 = vunpack.c.l.b16 %v325
        %v358 = vunpack.c.l.b16 %v326
        %v359 = vpack.c.b16 %v352, %v351
        %v360 = vpack.c.b16 %v354, %v353
        %v361 = vpack.c.b16 %v356, %v355
        %v362 = vpack.c.b16 %v358, %v357
        %v383 = vunpack.c.l.b16 %v327
        %v384 = vunpack.c.l.b16 %v328
        %v385 = vunpack.c.l.b16 %v329
        %v386 = vunpack.c.l.b16 %v330
        %v387 = vunpack.c.l.b16 %v331
        %v388 = vunpack.c.l.b16 %v332
        %v389 = vunpack.c.l.b16 %v333
        %v390 = vunpack.c.l.b16 %v334
        %v391 = vunpack.c.l.b16 %v335
        %v392 = vunpack.c.l.b16 %v336
        %v393 = vunpack.c.l.b16 %v337
        %v394 = vunpack.c.l.b16 %v338
        %v395 = vunpack.c.l.b16 %v339
        %v396 = vunpack.c.l.b16 %v340
        %v397 = vunpack.c.l.b16 %v341
        %v398 = vunpack.c.l.b16 %v342
        %v399 = vpack.c.b16 %v384, %v383
        %v400 = vpack.c.b16 %v386, %v385
        %v401 = vpack.c.b16 %v388, %v387
        %v402 = vpack.c.b16 %v390, %v389
        %v403 = vpack.c.b16 %v392, %v391
        %v404 = vpack.c.b16 %v394, %v393
        %v405 = vpack.c.b16 %v396, %v395
        %v406 = vpack.c.b16 %v398, %v397
        %415 = vmatprep.subr.bf16.mxu0 0
        %416 = vmatpush1.bf16.msra.mxu0 %v399
        %417 = vmatprep.subr.bf16.mxu0 0
        %418 = vmatpush1.bf16.msra.mxu0 %v400
        %419 = vmatprep.subr.bf16.mxu0 0
        %420 = vmatpush1.bf16.msra.mxu0 %v401
        %421 = vmatprep.subr.bf16.mxu0 0
        %422 = vmatpush1.bf16.msra.mxu0 %v402
        %423 = vmatprep.subr.bf16.mxu0 0
        %424 = vmatpush1.bf16.msra.mxu0 %v403
        %425 = vmatprep.subr.bf16.mxu0 0
        %426 = vmatpush1.bf16.msra.mxu0 %v404
        %427 = vmatprep.subr.bf16.mxu0 0
        %428 = vmatpush1.bf16.msra.mxu0 %v405
        %429 = vmatprep.subr.bf16.mxu0 0
        %430 = vmatpush1.bf16.msra.mxu0 %v406
        %431 = vmatprep.subr.bf16.mxu0 0
        %432 = vmatpush1.bf16.msra.mxu0 0
        %433 = vmatprep.subr.bf16.mxu0 0
        %434 = vmatpush1.bf16.msra.mxu0 0
        %435 = vmatprep.subr.bf16.mxu0 0
        %436 = vmatpush1.bf16.msra.mxu0 0
        %437 = vmatprep.subr.bf16.mxu0 0
        %438 = vmatpush1.bf16.msra.mxu0 0
        %439 = vmatprep.subr.bf16.mxu0 0
        %440 = vmatpush1.bf16.msra.mxu0 0
        %441 = vmatprep.subr.bf16.mxu0 0
        %442 = vmatpush1.bf16.msra.mxu0 0
        %443 = vmatprep.subr.bf16.mxu0 0
        %444 = vmatpush1.bf16.msra.mxu0 0
        %445 = vmatprep.subr.bf16.mxu0 0
        %446 = vmatpush1.bf16.msra.mxu0 0
        %447 = vmatprep.mubr.bf16.mxu0 0
        %448 = vmatmul.mubr.bf16.gmra.mrb[0].mxu0 %v359
        %v449 = vpop.f32.mrb[0].mxu0
        %v450 = vadd.f32 0.0, %v449
        %v451 = vpop.f32.mrb[0].mxu0
        %v452 = vpop.f32.mrb[0].mxu0
        %v453 = vadd.f32 0.0, %v452
        %v454 = vpop.f32.mrb[0].mxu0
        %455 = vmatprep.mubr.bf16.mxu0 0
        %456 = vmatmul.mubr.bf16.gmra.mrb[0].mxu0 %v360
        %v457 = vpop.f32.mrb[0].mxu0
        %v458 = vadd.f32 0.0, %v457
        %v459 = vpop.f32.mrb[0].mxu0
        %v460 = vpop.f32.mrb[0].mxu0
        %v461 = vadd.f32 0.0, %v460
        %v462 = vpop.f32.mrb[0].mxu0
        %463 = vmatprep.mubr.bf16.mxu0 0
        %464 = vmatmul.mubr.bf16.gmra.mrb[0].mxu0 %v361
        %v465 = vpop.f32.mrb[0].mxu0
        %v466 = vadd.f32 0.0, %v465
        %v467 = vpop.f32.mrb[0].mxu0
        %v468 = vpop.f32.mrb[0].mxu0
        %v469 = vadd.f32 0.0, %v468
        %v470 = vpop.f32.mrb[0].mxu0
        %471 = vmatprep.mubr.bf16.mxu0 0
        %472 = vmatmul.mubr.bf16.gmra.mrb[0].mxu0 %v362
        %v473 = vpop.f32.mrb[0].mxu0
        %v474 = vadd.f32 0.0, %v473
        %v475 = vpop.f32.mrb[0].mxu0
        %v476 = vpop.f32.mrb[0].mxu0
        %v477 = vadd.f32 0.0, %v476
        %v478 = vpop.f32.mrb[0].mxu0
        %479 = vdwg.mxu0
        %v480 = vadd.f32 %v311, %v450
        %v481 = vadd.f32 %v312, %v453
        %v482 = vadd.f32 %v313, %v458
        %v483 = vadd.f32 %v314, %v461
        %v484 = vadd.f32 %v315, %v466
        %v485 = vadd.f32 %v316, %v469
        %v486 = vadd.f32 %v317, %v474
        %v487 = vadd.f32 %v318, %v477
        %488 = vst [vmem:[#allocation2] sm:$0xff] %v480
        %489 = vst [vmem:[#allocation2 + $0x8] sm:$0xff] %v481
        %490 = vst [vmem:[#allocation2 + $0x10] sm:$0xff] %v482
        %491 = vst [vmem:[#allocation2 + $0x18] sm:$0xff] %v483
        %492 = vst [vmem:[#allocation2 + $0x20] sm:$0xff] %v484
        %493 = vst [vmem:[#allocation2 + $0x28] sm:$0xff] %v485
        %494 = vst [vmem:[#allocation2 + $0x30] sm:$0xff] %v486
        %495 = vst [vmem:[#allocation2 + $0x38] sm:$0xff] %v487
        // Predicated region
        $region57: #{tpu_custom_call.1} parent=39 // pred_check
          %p496 = pneg %p299
        $region58: #{tpu_custom_call.1} parent=39 // pred_check_branch
          %498 = sbr.rel (%p496) target = $region60
        $region59: #{tpu_custom_call.1} parent=39 // pred_region
          %v499 = vld [vmem:[#allocation2] sm:$0xff]
          %v500 = vld [vmem:[#allocation2 + $0x8] sm:$0xff]
          %v501 = vld [vmem:[#allocation2 + $0x10] sm:$0xff]
          %v502 = vld [vmem:[#allocation2 + $0x18] sm:$0xff]
          %v503 = vld [vmem:[#allocation2 + $0x20] sm:$0xff]
          %v504 = vld [vmem:[#allocation2 + $0x28] sm:$0xff]
          %v505 = vld [vmem:[#allocation2 + $0x30] sm:$0xff]
          %v506 = vld [vmem:[#allocation2 + $0x38] sm:$0xff]
          %v507 = vld [vmem:[%s2] sm:$0x1]
          %v509 = vlaneseq
          %v510 = vshrl.u32 %v509, 7
          %v511 = vsub.s32 0, %v510
          %v512 = vrot.slane %v507, %v511
          %v514 = vadd.f32 %v499, %v512
          %v515 = vadd.f32 %v500, %v512
          %v516 = vadd.f32 %v501, %v512
          %v517 = vadd.f32 %v502, %v512
          %v518 = vadd.f32 %v503, %v512
          %v519 = vadd.f32 %v504, %v512
          %v520 = vadd.f32 %v505, %v512
          %v521 = vadd.f32 %v506, %v512
          %v522 = vmax.f32 %v514, 0.0
          %v523 = vmax.f32 %v515, 0.0
          %v524 = vmax.f32 %v516, 0.0
          %v525 = vmax.f32 %v517, 0.0
          %v526 = vmax.f32 %v518, 0.0
          %v527 = vmax.f32 %v519, 0.0
          %v528 = vmax.f32 %v520, 0.0
          %v529 = vmax.f32 %v521, 0.0
          %v530 = vpack.c.bf16 %v523, %v522
          %v531 = vpack.c.bf16 %v525, %v524
          %v532 = vpack.c.bf16 %v527, %v526
          %v533 = vpack.c.bf16 %v529, %v528
          %v538 = vunpack.c.l.b16 %v530
          %v539 = vunpack.c.h.b16 %v530
          %v540 = vunpack.c.l.b16 %v531
          %v541 = vunpack.c.h.b16 %v531
          %v542 = vunpack.c.l.b16 %v532
          %v543 = vunpack.c.h.b16 %v532
          %v544 = vunpack.c.l.b16 %v533
          %v545 = vunpack.c.h.b16 %v533
          %v546 = vpack.c.b16 %v538, %v538
          %v547 = vpack.c.b16 %v539, %v539
          %v548 = vpack.c.b16 %v540, %v540
          %v549 = vpack.c.b16 %v541, %v541
          %v550 = vpack.c.b16 %v542, %v542
          %v551 = vpack.c.b16 %v543, %v543
          %v552 = vpack.c.b16 %v544, %v544
          %v553 = vpack.c.b16 %v545, %v545
          %562 = vst [vmem:[%s294] sm:$0xf] %v546
          %563 = vst [vmem:[%s294 + $0x8] sm:$0xf] %v547
          %564 = vst [vmem:[%s294 + $0x10] sm:$0xf] %v548
          %565 = vst [vmem:[%s294 + $0x18] sm:$0xf] %v549
          %566 = vst [vmem:[%s294 + $0x20] sm:$0xf] %v550
          %567 = vst [vmem:[%s294 + $0x28] sm:$0xf] %v551
          %568 = vst [vmem:[%s294 + $0x30] sm:$0xf] %v552
          %569 = vst [vmem:[%s294 + $0x38] sm:$0xf] %v553
          %v570 = vld [vmem:[#allocation8] sm:$0xf]
          %v571 = vld [vmem:[#allocation8 + $0x4] sm:$0xf]
          %v572 = vld [vmem:[#allocation8 + $0x8] sm:$0xf]
          %v573 = vld [vmem:[#allocation8 + $0xc] sm:$0xf]
          %v574 = vld [vmem:[#allocation8 + $0x10] sm:$0xf]
          %v575 = vld [vmem:[#allocation8 + $0x14] sm:$0xf]
          %v576 = vld [vmem:[#allocation8 + $0x18] sm:$0xf]
          %v577 = vld [vmem:[#allocation8 + $0x1c] sm:$0xf]
          %v578 = vld [vmem:[#allocation8 + $0x20] sm:$0xf]
          %v579 = vld [vmem:[#allocation8 + $0x24] sm:$0xf]
          %v580 = vld [vmem:[#allocation8 + $0x28] sm:$0xf]
          %v581 = vld [vmem:[#allocation8 + $0x2c] sm:$0xf]
          %v582 = vld [vmem:[#allocation8 + $0x30] sm:$0xf]
          %v583 = vld [vmem:[#allocation8 + $0x34] sm:$0xf]
          %v584 = vld [vmem:[#allocation8 + $0x38] sm:$0xf]
          %v585 = vld [vmem:[#allocation8 + $0x3c] sm:$0xf]
          %v586 = vld [vmem:[%s4] sm:$0x1]
          %v588 = vlaneseq
          %v589 = vshrl.u32 %v588, 7
          %v590 = vsub.s32 0, %v589
          %v591 = vrot.slane %v586, %v590
          %v609 = vunpack.c.l.b16 %v570
          %v610 = vunpack.c.l.b16 %v571
          %v611 = vunpack.c.l.b16 %v572
          %v612 = vunpack.c.l.b16 %v573
          %v613 = vunpack.c.l.b16 %v574
          %v614 = vunpack.c.l.b16 %v575
          %v615 = vunpack.c.l.b16 %v576
          %v616 = vunpack.c.l.b16 %v577
          %v617 = vunpack.c.l.b16 %v578
          %v618 = vunpack.c.l.b16 %v579
          %v619 = vunpack.c.l.b16 %v580
          %v620 = vunpack.c.l.b16 %v581
          %v621 = vunpack.c.l.b16 %v582
          %v622 = vunpack.c.l.b16 %v583
          %v623 = vunpack.c.l.b16 %v584
          %v624 = vunpack.c.l.b16 %v585
          %v625 = vpack.c.b16 %v610, %v609
          %v626 = vpack.c.b16 %v612, %v611
          %v627 = vpack.c.b16 %v614, %v613
          %v628 = vpack.c.b16 %v616, %v615
          %v629 = vpack.c.b16 %v618, %v617
          %v630 = vpack.c.b16 %v620, %v619
          %v631 = vpack.c.b16 %v622, %v621
          %v632 = vpack.c.b16 %v624, %v623
          %641 = vmatprep.subr.bf16.mxu0 0
          %642 = vmatpush1.bf16.msra.mxu0 %v625
          %643 = vmatprep.subr.bf16.mxu0 0
          %644 = vmatpush1.bf16.msra.mxu0 %v626
          %645 = vmatprep.subr.bf16.mxu0 0
          %646 = vmatpush1.bf16.msra.mxu0 %v627
          %647 = vmatprep.subr.bf16.mxu0 0
          %648 = vmatpush1.bf16.msra.mxu0 %v628
          %649 = vmatprep.subr.bf16.mxu0 0
          %650 = vmatpush1.bf16.msra.mxu0 %v629
          %651 = vmatprep.subr.bf16.mxu0 0
          %652 = vmatpush1.bf16.msra.mxu0 %v630
          %653 = vmatprep.subr.bf16.mxu0 0
          %654 = vmatpush1.bf16.msra.mxu0 %v631
          %655 = vmatprep.subr.bf16.mxu0 0
          %656 = vmatpush1.bf16.msra.mxu0 %v632
          %657 = vmatprep.subr.bf16.mxu0 0
          %658 = vmatpush1.bf16.msra.mxu0 0
          %659 = vmatprep.subr.bf16.mxu0 0
          %660 = vmatpush1.bf16.msra.mxu0 0
          %661 = vmatprep.subr.bf16.mxu0 0
          %662 = vmatpush1.bf16.msra.mxu0 0
          %663 = vmatprep.subr.bf16.mxu0 0
          %664 = vmatpush1.bf16.msra.mxu0 0
          %665 = vmatprep.subr.bf16.mxu0 0
          %666 = vmatpush1.bf16.msra.mxu0 0
          %667 = vmatprep.subr.bf16.mxu0 0
          %668 = vmatpush1.bf16.msra.mxu0 0
          %669 = vmatprep.subr.bf16.mxu0 0
          %670 = vmatpush1.bf16.msra.mxu0 0
          %671 = vmatprep.subr.bf16.mxu0 0
          %672 = vmatpush1.bf16.msra.mxu0 0
          %673 = vmatprep.mubr.bf16.mxu0 0
          %674 = vmatmul.mubr.bf16.gmra.mrb[0].mxu0 %v530
          %v675 = vpop.f32.mrb[0].mxu0
          %v676 = vadd.f32 %v591, %v675
          %v677 = vpop.f32.mrb[0].mxu0
          %v678 = vpop.f32.mrb[0].mxu0
          %v679 = vadd.f32 %v591, %v678
          %v680 = vpop.f32.mrb[0].mxu0
          %681 = vmatprep.mubr.bf16.mxu0 0
          %682 = vmatmul.mubr.bf16.gmra.mrb[0].mxu0 %v531
          %v683 = vpop.f32.mrb[0].mxu0
          %v684 = vadd.f32 %v591, %v683
          %v685 = vpop.f32.mrb[0].mxu0
          %v686 = vpop.f32.mrb[0].mxu0
          %v687 = vadd.f32 %v591, %v686
          %v688 = vpop.f32.mrb[0].mxu0
          %689 = vmatprep.mubr.bf16.mxu0 0
          %690 = vmatmul.mubr.bf16.gmra.mrb[0].mxu0 %v532
          %v691 = vpop.f32.mrb[0].mxu0
          %v692 = vadd.f32 %v591, %v691
          %v693 = vpop.f32.mrb[0].mxu0
          %v694 = vpop.f32.mrb[0].mxu0
          %v695 = vadd.f32 %v591, %v694
          %v696 = vpop.f32.mrb[0].mxu0
          %697 = vmatprep.mubr.bf16.mxu0 0
          %698 = vmatmul.mubr.bf16.gmra.mrb[0].mxu0 %v533
          %v699 = vpop.f32.mrb[0].mxu0
          %v700 = vadd.f32 %v591, %v699
          %v701 = vpop.f32.mrb[0].mxu0
          %v702 = vpop.f32.mrb[0].mxu0
          %v703 = vadd.f32 %v591, %v702
          %v704 = vpop.f32.mrb[0].mxu0
          %705 = vdwg.mxu0
          %v706 = vpack.c.bf16 %v679, %v676
          %v707 = vpack.c.bf16 %v687, %v684
          %v708 = vpack.c.bf16 %v695, %v692
          %v709 = vpack.c.bf16 %v703, %v700
          %v714 = vunpack.c.l.b16 %v706
          %v715 = vunpack.c.h.b16 %v706
          %v716 = vunpack.c.l.b16 %v707
          %v717 = vunpack.c.h.b16 %v707
          %v718 = vunpack.c.l.b16 %v708
          %v719 = vunpack.c.h.b16 %v708
          %v720 = vunpack.c.l.b16 %v709
          %v721 = vunpack.c.h.b16 %v709
          %v722 = vpack.c.b16 %v714, %v714
          %v723 = vpack.c.b16 %v715, %v715
          %v724 = vpack.c.b16 %v716, %v716
          %v725 = vpack.c.b16 %v717, %v717
          %v726 = vpack.c.b16 %v718, %v718
          %v727 = vpack.c.b16 %v719, %v719
          %v728 = vpack.c.b16 %v720, %v720
          %v729 = vpack.c.b16 %v721, %v721
          %738 = vst [vmem:[%s294 + $0x4] sm:$0xf] %v722
          %739 = vst [vmem:[%s294 + $0xc] sm:$0xf] %v723
          %740 = vst [vmem:[%s294 + $0x14] sm:$0xf] %v724
          %741 = vst [vmem:[%s294 + $0x1c] sm:$0xf] %v725
          %742 = vst [vmem:[%s294 + $0x24] sm:$0xf] %v726
          %743 = vst [vmem:[%s294 + $0x2c] sm:$0xf] %v727
          %744 = vst [vmem:[%s294 + $0x34] sm:$0xf] %v728
          %745 = vst [vmem:[%s294 + $0x3c] sm:$0xf] %v729
        $region60: #{tpu_custom_call.1} parent=39 // pred_fallthru
          _
        %s746 = sand.u32 %s160, 1
        %s747 = scalar_lea.sflag [#allocation5], %s746
        %s748 = sand.u32 %s160, 1
        %s749 = smul.addr %s748, 64
        %s750 = scalar_lea.vmem [#allocation9], %s749
        // Predicated region
        $region61: #{tpu_custom_call.1} parent=39 // pred_check
          %p751 = pneg %p170
        $region62: #{tpu_custom_call.1} parent=39 // pred_check_branch
          %753 = sbr.rel (%p751) target = $region64
        $region63: #{tpu_custom_call.1} parent=39 // pred_region
          %s754 = smul.u32 8, %s27
          %s756 = ssub.s32 1024, 1024
          %757 = vsyncadd %s747, %s756
          %s758 = smul.addr %s754, 2
          %s759 = smul.addr %s758, 64
          %s760 = scalar_lea.hbm %s5, %s759
          %s761 = sshll.u32 %s750, 4
          %s762 = int_to_ptr.vmem [resolvable:$true] %s761
          %767 = dma.vmem_to_hbm [thread:$0]  %s762, 1024, %s760, %s747, 128, 128, 8
        $region64: #{tpu_custom_call.1} parent=39 // pred_fallthru
          _
      $region40: #{tpu_custom_call.1} parent=5 // pred_fallthru
        _
      %p768 = scmp.le.s32.totalorder 2, %s18
      // Predicated region
      $region65: #{tpu_custom_call.1} parent=5 // pred_check
        %p769 = pneg %p768
      $region66: #{tpu_custom_call.1} parent=5 // pred_check_branch
        %771 = sbr.rel (%p769) target = $region68
      $region67: #{tpu_custom_call.1} parent=5 // pred_region
        %s772 = ssub.s32 %s18, 2
        // Predicated region
        $region69: #{tpu_custom_call.1} parent=67 // pred_check
          %p773 = pneg %p176
        $region70: #{tpu_custom_call.1} parent=67 // pred_check_branch
          %775 = sbr.rel (%p773) target = $region72
        $region71: #{tpu_custom_call.1} parent=67 // pred_region
          %s776 = sand.u32 %s161, 1
          %s777 = scalar_lea.sflag [#allocation5], %s776
          %s778 = sand.u32 %s161, 1
          %s779 = smul.addr %s778, 64
          %s780 = scalar_lea.vmem [#allocation9], %s779
          %781 = dma.done %s777, 1024
        $region72: #{tpu_custom_call.1} parent=67 // pred_fallthru
          _
      $region68: #{tpu_custom_call.1} parent=5 // pred_fallthru
        _
    $region6: #{tpu_custom_call.1} parent=1 // loop_footer
      %s22 = sadd.s32 1, %s18
    $region7: #{tpu_custom_call.1} parent=1 // loop_footer_branch
      %17 = sbr.rel target = $region3
    $region8: #{tpu_custom_call.1} parent=1 // loop_exit
      _
    %782 = vsyncpa [#allocation4], 1
    %s783 = scalar_lea.sflag [#allocation4], 1
    %784 = vsyncpa %s783, 1
    %785 = vsyncpa [#allocation7], 1
    %786 = vsyncpa [#allocation5], 1
    %s787 = scalar_lea.sflag [#allocation5], 1
    %788 = vsyncpa %s787, 1

</llo_original>
